<compile_context>
chip_gen: v6e
topology: v6e:2x2x1
jax: 0.10.0
libtpu: 0.0.40
codegen_flags: <defaults>
</compile_context>

<pallas_src>
import functools

import jax
import jax.numpy as jnp
from jax.experimental import pallas as pl
from jax.experimental.pallas import tpu as pltpu

IN_DIM = 20
HID_DIM = 64
OUT_DIM = 2
OUT_SUB = 8  # fc2 outputs zero-padded 2 -> 8 (one full sublane group)


def _round_up(x, m):
    return (x + m - 1) // m * m


def mlp_kernel(x_ref, w1_ref, b1_ref, w2t_ref, b2t_ref, o_ref):
    # x_ref:   [TILE_B, 20]  f32   (bf16 cast happens in-kernel)
    # w1_ref:  [20, 64]      bf16  (resident)
    # b1_ref:  [1, 64]       f32   (resident)
    # w2t_ref: [8, 64]       bf16  (resident; fc2 weight transposed, padded 2->8 rows)
    # b2t_ref: [8, 1]        f32   (resident; fc2 bias padded 2->8)
    # o_ref:   [8, TILE_B]   f32   (transposed: out features on sublanes, batch on lanes)
    x = x_ref[...].astype(jnp.bfloat16)
    h = jnp.dot(x, w1_ref[...], preferred_element_type=jnp.float32) + b1_ref[...]
    h = jnp.maximum(h, 0.0).astype(jnp.bfloat16)
    # y_t[o, b] = sum_k w2t[o, k] * h[b, k]   (q @ k.T pattern) -> (8, TILE_B)
    y_t = jax.lax.dot_general(
        w2t_ref[...], h,
        dimension_numbers=(((1,), (1,)), ((), ())),
        preferred_element_type=jnp.float32)
    o_ref[...] = y_t + b2t_ref[...]


@functools.partial(jax.jit, static_argnames=("tile_b",))
def simple_net_forward(x, w1, b1, w2, b2, *, tile_b=4096):
    B = x.shape[0]

    # Constant-sized parameter prep (negligible bytes): fc2 transposed + zero-padded
    # to 8 output rows so the kernel's store is lane-dense over the batch axis.
    w2t = jnp.zeros((OUT_SUB, HID_DIM), jnp.bfloat16).at[:OUT_DIM, :].set(
        w2.astype(jnp.bfloat16).T)
    b2t = jnp.zeros((OUT_SUB, 1), jnp.float32).at[:OUT_DIM, 0].set(
        b2.reshape(-1).astype(jnp.float32))
    w1_bf = w1.astype(jnp.bfloat16)
    b1_f = b1.reshape(1, HID_DIM).astype(jnp.float32)

    # Batch tile: multiple of 128 (batch sits on the lane axis of the output).
    tile_b = max(128, _round_up(tile_b, 128))
    b_lane = _round_up(B, 128)
    tile_b = min(tile_b, b_lane)
    # Keep >= 2 grid steps when possible so the "parallel" axis can use both
    # v7x TensorCores (no-op on v5e/v6e).
    if pl.cdiv(B, tile_b) < 2 and b_lane >= 256:
        tile_b = _round_up(pl.cdiv(b_lane, 2), 128)
    grid_b = pl.cdiv(B, tile_b)
    b_pad = grid_b * tile_b

    flops = 2 * b_pad * (IN_DIM * HID_DIM + HID_DIM * OUT_SUB)
    bytes_accessed = (
        B * IN_DIM * 4                       # x read (f32, once, in-kernel cast)
        + w1_bf.size * 2 + w2t.size * 2      # resident bf16 weights
        + b1_f.size * 4 + b2t.size * 4       # resident f32 biases
        + b_pad * OUT_SUB * 4                # transposed f32 output (32 B/row)
    )

    out_t = pl.pallas_call(
        mlp_kernel,
        out_shape=jax.ShapeDtypeStruct((OUT_SUB, b_pad), jnp.float32),
        grid=(grid_b,),
        in_specs=[
            pl.BlockSpec((tile_b, IN_DIM), lambda i: (i, 0)),    # x tile (last block may be partial)
            pl.BlockSpec((IN_DIM, HID_DIM), lambda i: (0, 0)),   # w1 (resident)
            pl.BlockSpec((1, HID_DIM), lambda i: (0, 0)),        # b1 (resident)
            pl.BlockSpec((OUT_SUB, HID_DIM), lambda i: (0, 0)),  # w2ᵀ padded (resident)
            pl.BlockSpec((OUT_SUB, 1), lambda i: (0, 0)),        # b2 padded (resident)
        ],
        out_specs=pl.BlockSpec((OUT_SUB, tile_b), lambda i: (0, i)),
        compiler_params=pltpu.CompilerParams(
            dimension_semantics=("parallel",),
            vmem_limit_bytes=32 * 1024 * 1024,
        ),
        cost_estimate=pl.CostEstimate(
            flops=flops, transcendentals=0, bytes_accessed=bytes_accessed),
    )(x, w1_bf, b1_f, w2t, b2t)

    # Valid region of the tiny transposed buffer, back to (B, 2).
    return out_t[:OUT_DIM, :B].T


def init_params(key):
    # PyTorch nn.Linear default init: U(-1/sqrt(fan_in), +1/sqrt(fan_in)).
    k1, k2, k3, k4 = jax.random.split(key, 4)
    bnd1 = 1.0 / jnp.sqrt(IN_DIM)
    bnd2 = 1.0 / jnp.sqrt(HID_DIM)
    w1 = jax.random.uniform(k1, (IN_DIM, HID_DIM), jnp.float32, -bnd1, bnd1)
    b1 = jax.random.uniform(k2, (1, HID_DIM), jnp.float32, -bnd1, bnd1)
    w2 = jax.random.uniform(k3, (HID_DIM, OUT_DIM), jnp.float32, -bnd2, bnd2)
    b2 = jax.random.uniform(k4, (1, OUT_DIM), jnp.float32, -bnd2, bnd2)
    return w1, b1, w2, b2


if __name__ == "__main__":
    key = jax.random.PRNGKey(0)
    k_params, k_x = jax.random.split(key)
    w1, b1, w2, b2 = init_params(k_params)

    B = 8
    x = jax.random.normal(k_x, (B, IN_DIM), jnp.float32)

    out = simple_net_forward(x, w1, b1, w2, b2)
    out = jax.block_until_ready(out)
    assert out.shape == (B, OUT_DIM)

    # Reference 1: same bf16 casts, f32 accumulate (tight tolerance).
    x_bf, w1_bf, w2_bf = (a.astype(jnp.bfloat16) for a in (x, w1, w2))
    h_ref = jnp.maximum(
        jnp.dot(x_bf, w1_bf, preferred_element_type=jnp.float32) + b1, 0.0)
    ref_bf = jnp.dot(h_ref.astype(jnp.bfloat16), w2_bf,
                     preferred_element_type=jnp.float32) + b2
    assert jnp.allclose(out, ref_bf, atol=1e-3, rtol=1e-3)

    # Reference 2: full f32 math (loose tolerance accounts for bf16 inputs).
    ref_f32 = jnp.maximum(x @ w1 + b1, 0.0) @ w2 + b2
    assert jnp.allclose(out, ref_f32, atol=5e-2, rtol=5e-2)

    print("KERNEL_OK")
</pallas_src>

<mosaic_0001>
module attributes {stable_mosaic.version = 11 : i64} {
  func.func @mlp_kernel(%arg0: i32, %arg1: memref<128x20xf32, #tpu.memory_space<vmem>>, %arg2: memref<20x64xbf16, #tpu.memory_space<vmem>>, %arg3: memref<1x64xf32, #tpu.memory_space<vmem>>, %arg4: memref<8x64xbf16, #tpu.memory_space<vmem>>, %arg5: memref<8x1xf32, #tpu.memory_space<vmem>>, %arg6: memref<8x128xf32, #tpu.memory_space<vmem>>) attributes {dimension_semantics = [#tpu.dimension_semantics<parallel>], iteration_bounds = array<i64: 1>, scalar_prefetch = 0 : i64, scratch_operands = 0 : i64, tpu.core_type = #tpu.core_type<tc>, window_params = [{transform_indices = @transform_0, window_bounds = array<i64: 128, 20>}, {pipeline_mode = #tpu.pipeline_mode<synchronous>, transform_indices = @transform_1, window_bounds = array<i64: 20, 64>}, {pipeline_mode = #tpu.pipeline_mode<synchronous>, transform_indices = @transform_2, window_bounds = array<i64: 1, 64>}, {pipeline_mode = #tpu.pipeline_mode<synchronous>, transform_indices = @transform_3, window_bounds = array<i64: 8, 64>}, {pipeline_mode = #tpu.pipeline_mode<synchronous>, transform_indices = @transform_4, window_bounds = array<i64: 8, 1>}, {transform_indices = @transform_5, window_bounds = array<i64: 8, 128>}]} {
    %c0 = arith.constant 0 : index
    %c0_0 = arith.constant 0 : index
    %0 = vector.load %arg1[%c0, %c0_0] : memref<128x20xf32, #tpu.memory_space<vmem>>, vector<128x20xf32>
    %1 = arith.truncf %0 : vector<128x20xf32> to vector<128x20xbf16>
    %c0_1 = arith.constant 0 : index
    %c0_2 = arith.constant 0 : index
    %2 = vector.load %arg2[%c0_1, %c0_2] : memref<20x64xbf16, #tpu.memory_space<vmem>>, vector<20x64xbf16>
    %cst = arith.constant dense<0.000000e+00> : vector<128x64xf32>
    %3 = tpu.matmul %1, %2, %cst {dimension_numbers = #tpu.dot_dimension_numbers<[1], [0], [0], [1], [0, 0, 1, 1], [], []>} : vector<128x20xbf16>, vector<20x64xbf16>, vector<128x64xf32> -> vector<128x64xf32>
    %c0_3 = arith.constant 0 : index
    %c0_4 = arith.constant 0 : index
    %4 = vector.load %arg3[%c0_3, %c0_4] : memref<1x64xf32, #tpu.memory_space<vmem>>, vector<1x64xf32>
    %5 = vector.broadcast %4 : vector<1x64xf32> to vector<128x64xf32>
    %6 = arith.addf %3, %5 : vector<128x64xf32>
    %cst_5 = arith.constant 0.000000e+00 : f32
    %7 = vector.broadcast %cst_5 : f32 to vector<128x64xf32>
    %8 = arith.maximumf %6, %7 : vector<128x64xf32>
    %9 = arith.truncf %8 : vector<128x64xf32> to vector<128x64xbf16>
    %c0_6 = arith.constant 0 : index
    %c0_7 = arith.constant 0 : index
    %10 = vector.load %arg4[%c0_6, %c0_7] : memref<8x64xbf16, #tpu.memory_space<vmem>>, vector<8x64xbf16>
    %cst_8 = arith.constant dense<0.000000e+00> : vector<8x128xf32>
    %11 = tpu.matmul %10, %9, %cst_8 {dimension_numbers = #tpu.dot_dimension_numbers<[1], [1], [0], [0], [0, 0, 1, 0], [], []>} : vector<8x64xbf16>, vector<128x64xbf16>, vector<8x128xf32> -> vector<8x128xf32>
    %c0_9 = arith.constant 0 : index
    %c0_10 = arith.constant 0 : index
    %12 = vector.load %arg5[%c0_9, %c0_10] : memref<8x1xf32, #tpu.memory_space<vmem>>, vector<8x1xf32>
    %13 = vector.broadcast %12 : vector<8x1xf32> to vector<8x128xf32>
    %14 = arith.addf %11, %13 : vector<8x128xf32>
    %c0_11 = arith.constant 0 : index
    %c0_12 = arith.constant 0 : index
    %15 = vector.load %arg6[%c0_11, %c0_12] : memref<8x128xf32, #tpu.memory_space<vmem>>, vector<8x128xf32>
    tpu.vector_store %arg6[%c0_11, %c0_12], %14 {strides = array<i32>} : memref<8x128xf32, #tpu.memory_space<vmem>>, vector<8x128xf32>,
    return
  }
  func.func @transform_0(%arg0: i32) -> (i32, i32) {
    %c0_i32 = arith.constant 0 : i32
    %c0_i32_0 = arith.constant 0 : i32
    return %arg0, %c0_i32 : i32, i32
  }
  func.func @transform_1(%arg0: i32) -> (i32, i32) {
    %c0_i32 = arith.constant 0 : i32
    %c0_i32_0 = arith.constant 0 : i32
    %c0_i32_1 = arith.constant 0 : i32
    return %c0_i32, %c0_i32_0 : i32, i32
  }
  func.func @transform_2(%arg0: i32) -> (i32, i32) {
    %c0_i32 = arith.constant 0 : i32
    %c0_i32_0 = arith.constant 0 : i32
    %c0_i32_1 = arith.constant 0 : i32
    return %c0_i32, %c0_i32_0 : i32, i32
  }
  func.func @transform_3(%arg0: i32) -> (i32, i32) {
    %c0_i32 = arith.constant 0 : i32
    %c0_i32_0 = arith.constant 0 : i32
    %c0_i32_1 = arith.constant 0 : i32
    return %c0_i32, %c0_i32_0 : i32, i32
  }
  func.func @transform_4(%arg0: i32) -> (i32, i32) {
    %c0_i32 = arith.constant 0 : i32
    %c0_i32_0 = arith.constant 0 : i32
    %c0_i32_1 = arith.constant 0 : i32
    return %c0_i32, %c0_i32_0 : i32, i32
  }
  func.func @transform_5(%arg0: i32) -> (i32, i32) {
    %c0_i32 = arith.constant 0 : i32
    %c0_i32_0 = arith.constant 0 : i32
    return %c0_i32, %arg0 : i32, i32
  }
}

</mosaic_0001>

<llo_original>
// kernel: simple_net_forward.1
$region0: #{simple_net_forward.1}
  #allocation0 [shape = 'u32[]', space=smem, size = 0x4, offset = 0x4, fixed_abs, tag = 'smem constant byte address 0x4 - core index']
  #allocation1 [shape = 'u32[144,128]{1,0:T(1,128)}', space=vmem, size = 0x12000, scoped, tag = 'internal scratch']
  %s0 = inlined_call_operand.vmem [shape: f32[8,20], index: 0, kind: input, shape index: {}]
  %s1 = inlined_call_operand.vmem [shape: bf16[20,64], index: 1, kind: input, shape index: {}]
  %s2 = inlined_call_operand.vmem [shape: f32[1,64], index: 2, kind: input, shape index: {}]
  %s3 = inlined_call_operand.vmem [shape: bf16[8,64], index: 3, kind: input, shape index: {}]
  %s4 = inlined_call_operand.vmem [shape: f32[8,1], index: 4, kind: input, shape index: {}]
  %s5 = inlined_call_operand.vmem [shape: f32[8,128], index: 5, kind: output, shape index: {}]
  %s6 = sld [smem:[#allocation0]]
  $region30: #{simple_net_forward.1} parent=0
    _
  %s8 = ssub.s32 1, %s6
  %s9 = scalar_select 0, %s8, %s6
  // Predicated region
  $region2: #{simple_net_forward.1} parent=0 // pred_check
    _
  $region3: #{simple_net_forward.1} parent=0 // pred_check_branch
    %11 = sbr.rel (0) target = $region5
  $region4: #{simple_net_forward.1} parent=0 // pred_region
    _
  $region5: #{simple_net_forward.1} parent=0 // pred_fallthru
    _
  // Predicated region
  $region6: #{simple_net_forward.1} parent=0 // pred_check
    _
  $region7: #{simple_net_forward.1} parent=0 // pred_check_branch
    %13 = sbr.rel (0) target = $region9
  $region8: #{simple_net_forward.1} parent=0 // pred_region
    _
  $region9: #{simple_net_forward.1} parent=0 // pred_fallthru
    _
  // Predicated region
  $region10: #{simple_net_forward.1} parent=0 // pred_check
    _
  $region11: #{simple_net_forward.1} parent=0 // pred_check_branch
    %15 = sbr.rel (0) target = $region13
  $region12: #{simple_net_forward.1} parent=0 // pred_region
    _
  $region13: #{simple_net_forward.1} parent=0 // pred_fallthru
    _
  // Predicated region
  $region14: #{simple_net_forward.1} parent=0 // pred_check
    _
  $region15: #{simple_net_forward.1} parent=0 // pred_check_branch
    %17 = sbr.rel (0) target = $region17
  $region16: #{simple_net_forward.1} parent=0 // pred_region
    _
  $region17: #{simple_net_forward.1} parent=0 // pred_fallthru
    _
  // Predicated region
  $region18: #{simple_net_forward.1} parent=0 // pred_check
    _
  $region19: #{simple_net_forward.1} parent=0 // pred_check_branch
    %19 = sbr.rel (0) target = $region21
  $region20: #{simple_net_forward.1} parent=0 // pred_region
    _
  $region21: #{simple_net_forward.1} parent=0 // pred_fallthru
    _
  %v21 = vld [vmem:[%s0] sm:$0xff]
  %v22 = vld [vmem:[%s0 + $0x8] sm:$0xff]
  %v23 = vld [vmem:[%s0 + $0x10] sm:$0xff]
  %v24 = vld [vmem:[%s0 + $0x18] sm:$0xff]
  %v25 = vld [vmem:[%s0 + $0x20] sm:$0xff]
  %v26 = vld [vmem:[%s0 + $0x28] sm:$0xff]
  %v27 = vld [vmem:[%s0 + $0x30] sm:$0xff]
  %v28 = vld [vmem:[%s0 + $0x38] sm:$0xff]
  %v29 = vld [vmem:[%s0 + $0x40] sm:$0xff]
  %v30 = vld [vmem:[%s0 + $0x48] sm:$0xff]
  %v31 = vld [vmem:[%s0 + $0x50] sm:$0xff]
  %v32 = vld [vmem:[%s0 + $0x58] sm:$0xff]
  %v33 = vld [vmem:[%s0 + $0x60] sm:$0xff]
  %v34 = vld [vmem:[%s0 + $0x68] sm:$0xff]
  %v35 = vld [vmem:[%s0 + $0x70] sm:$0xff]
  %v36 = vld [vmem:[%s0 + $0x78] sm:$0xff]
  %v37 = vpack.c.bf16 %v22, %v21
  %v38 = vpack.c.bf16 %v24, %v23
  %v39 = vpack.c.bf16 %v26, %v25
  %v40 = vpack.c.bf16 %v28, %v27
  %v41 = vpack.c.bf16 %v30, %v29
  %v42 = vpack.c.bf16 %v32, %v31
  %v43 = vpack.c.bf16 %v34, %v33
  %v44 = vpack.c.bf16 %v36, %v35
  %v45 = vld [vmem:[%s1] sm:$0xf]
  %v46 = vld [vmem:[%s1 + $0x4] sm:$0xf]
  %v47 = vld [vmem:[%s1 + $0x8] sm:$0x3]
  %v48 = vld [vmem:[%s2] sm:$0x1]
  %v50 = vlaneseq
  %v51 = vshrl.u32 %v50, 7
  %v52 = vsub.s32 0, %v51
  %v53 = vrot.slane %v48, %v52
  %v58 = vunpack.c.l.b16 %v45
  %v59 = vunpack.c.l.b16 %v46
  %v60 = vunpack.c.l.b16 %v47
  %v61 = vpack.c.b16 %v59, %v58
  %v62 = vpack.c.b16 %v60, %v60
  %vm64 = vcmask 162816
  %v66 = vsel %vm64, %v37, 0
  %v69 = vsel %vm64, %v38, 0
  %v72 = vsel %vm64, %v39, 0
  %v75 = vsel %vm64, %v40, 0
  %v78 = vsel %vm64, %v41, 0
  %v81 = vsel %vm64, %v42, 0
  %v84 = vsel %vm64, %v43, 0
  %v87 = vsel %vm64, %v44, 0
  %vm89 = vcmask 1041408
  %v91 = vsel %vm89, %v62, 0
  %93 = vmatprep.subr.bf16.mxu0 0
  %94 = vmatpush1.bf16.msra.mxu0 0
  %95 = vmatprep.subr.bf16.mxu0 0
  %96 = vmatpush1.bf16.msra.mxu0 0
  %97 = vmatprep.subr.bf16.mxu0 0
  %98 = vmatpush1.bf16.msra.mxu0 0
  %99 = vmatprep.subr.bf16.mxu0 0
  %100 = vmatpush1.bf16.msra.mxu0 0
  %101 = vmatprep.subr.bf16.mxu0 0
  %102 = vmatpush1.bf16.msra.mxu0 0
  %103 = vmatprep.subr.bf16.mxu0 0
  %104 = vmatpush1.bf16.msra.mxu0 0
  %105 = vmatprep.subr.bf16.mxu0 0
  %106 = vmatpush1.bf16.msra.mxu0 %v91
  %107 = vmatprep.subr.bf16.mxu0 0
  %108 = vmatpush1.bf16.msra.mxu0 %v61
  %109 = vmatprep.subr.bf16.mxu0 0
  %110 = vmatpush2.bf16.msra.mxu0 0
  %111 = vmatprep.subr.bf16.mxu0 0
  %112 = vmatpush2.bf16.msra.mxu0 0
  %113 = vmatprep.subr.bf16.mxu0 0
  %114 = vmatpush2.bf16.msra.mxu0 0
  %115 = vmatprep.subr.bf16.mxu0 0
  %116 = vmatpush2.bf16.msra.mxu0 0
  %117 = vmatprep.subr.bf16.mxu0 0
  %118 = vmatpush2.bf16.msra.mxu0 0
  %119 = vmatprep.subr.bf16.mxu0 0
  %120 = vmatpush2.bf16.msra.mxu0 0
  %121 = vmatprep.subr.bf16.mxu0 0
  %122 = vmatpush2.bf16.msra.mxu0 0
  %123 = vmatprep.subr.bf16.mxu0 0
  %124 = vmatpush2.bf16.msra.mxu0 0
  %125 = vmatprep.mubr.bf16.mxu0 0
  %126 = vmatmul.mubr.bf16.gmra.mxu0 %v66
  %v127 = vpop.f32.mrf.mxu0
  %v128 = vadd.f32 %v53, %v127
  %v129 = vpop.f32.mrf.mxu0
  %v130 = vpop.f32.mrf.mxu0
  %v131 = vadd.f32 %v53, %v130
  %v132 = vpop.f32.mrf.mxu0
  %133 = vmatprep.mubr.bf16.mxu0 0
  %134 = vmatmul.mubr.bf16.gmra.mxu0 %v69
  %v135 = vpop.f32.mrf.mxu0
  %v136 = vadd.f32 %v53, %v135
  %v137 = vpop.f32.mrf.mxu0
  %v138 = vpop.f32.mrf.mxu0
  %v139 = vadd.f32 %v53, %v138
  %v140 = vpop.f32.mrf.mxu0
  %141 = vmatprep.mubr.bf16.mxu0 0
  %142 = vmatmul.mubr.bf16.gmra.mxu0 %v72
  %v143 = vpop.f32.mrf.mxu0
  %v144 = vadd.f32 %v53, %v143
  %v145 = vpop.f32.mrf.mxu0
  %v146 = vpop.f32.mrf.mxu0
  %v147 = vadd.f32 %v53, %v146
  %v148 = vpop.f32.mrf.mxu0
  %149 = vmatprep.mubr.bf16.mxu0 0
  %150 = vmatmul.mubr.bf16.gmra.mxu0 %v75
  %v151 = vpop.f32.mrf.mxu0
  %v152 = vadd.f32 %v53, %v151
  %v153 = vpop.f32.mrf.mxu0
  %v154 = vpop.f32.mrf.mxu0
  %v155 = vadd.f32 %v53, %v154
  %v156 = vpop.f32.mrf.mxu0
  %157 = vmatprep.mubr.bf16.mxu0 0
  %158 = vmatmul.mubr.bf16.gmra.mxu0 %v78
  %v159 = vpop.f32.mrf.mxu0
  %v160 = vadd.f32 %v53, %v159
  %v161 = vpop.f32.mrf.mxu0
  %v162 = vpop.f32.mrf.mxu0
  %v163 = vadd.f32 %v53, %v162
  %v164 = vpop.f32.mrf.mxu0
  %165 = vmatprep.mubr.bf16.mxu0 0
  %166 = vmatmul.mubr.bf16.gmra.mxu0 %v81
  %v167 = vpop.f32.mrf.mxu0
  %v168 = vadd.f32 %v53, %v167
  %v169 = vpop.f32.mrf.mxu0
  %v170 = vpop.f32.mrf.mxu0
  %v171 = vadd.f32 %v53, %v170
  %v172 = vpop.f32.mrf.mxu0
  %173 = vmatprep.mubr.bf16.mxu0 0
  %174 = vmatmul.mubr.bf16.gmra.mxu0 %v84
  %v175 = vpop.f32.mrf.mxu0
  %v176 = vadd.f32 %v53, %v175
  %v177 = vpop.f32.mrf.mxu0
  %v178 = vpop.f32.mrf.mxu0
  %v179 = vadd.f32 %v53, %v178
  %v180 = vpop.f32.mrf.mxu0
  %181 = vmatprep.mubr.bf16.mxu0 0
  %182 = vmatmul.mubr.bf16.gmra.mxu0 %v87
  %v183 = vpop.f32.mrf.mxu0
  %v184 = vadd.f32 %v53, %v183
  %v185 = vpop.f32.mrf.mxu0
  %v186 = vpop.f32.mrf.mxu0
  %v187 = vadd.f32 %v53, %v186
  %v188 = vpop.f32.mrf.mxu0
  %189 = vdwg.mxu0
  %v190 = vmax.f32 %v128, 0.0
  %v191 = vmax.f32 %v131, 0.0
  %v192 = vmax.f32 %v136, 0.0
  %v193 = vmax.f32 %v139, 0.0
  %v194 = vmax.f32 %v144, 0.0
  %v195 = vmax.f32 %v147, 0.0
  %v196 = vmax.f32 %v152, 0.0
  %v197 = vmax.f32 %v155, 0.0
  %v198 = vmax.f32 %v160, 0.0
  %v199 = vmax.f32 %v163, 0.0
  %v200 = vmax.f32 %v168, 0.0
  %v201 = vmax.f32 %v171, 0.0
  %v202 = vmax.f32 %v176, 0.0
  %v203 = vmax.f32 %v179, 0.0
  %v204 = vmax.f32 %v184, 0.0
  %v205 = vmax.f32 %v187, 0.0
  %v206 = vpack.c.bf16 %v191, %v190
  %v207 = vpack.c.bf16 %v193, %v192
  %v208 = vpack.c.bf16 %v195, %v194
  %v209 = vpack.c.bf16 %v197, %v196
  %v210 = vpack.c.bf16 %v199, %v198
  %v211 = vpack.c.bf16 %v201, %v200
  %v212 = vpack.c.bf16 %v203, %v202
  %v213 = vpack.c.bf16 %v205, %v204
  %v214 = vld [vmem:[%s3] sm:$0xf]
  %v215 = vld [vmem:[%s4] sm:$0xff]
  %217 = vset.pattern.permute.xlu0 0
  %218 = vperm.xlu0 %217, %v215
  %v219 = vpop.permute.xlu0 %218
  %vm221 = vcmask 523264
  %v223 = vsel %vm221, %v214, 0
  %v226 = vsel %vm221, %v206, 0
  %v229 = vsel %vm221, %v207, 0
  %v232 = vsel %vm221, %v208, 0
  %v235 = vsel %vm221, %v209, 0
  %v238 = vsel %vm221, %v210, 0
  %v241 = vsel %vm221, %v211, 0
  %v244 = vsel %vm221, %v212, 0
  %v247 = vsel %vm221, %v213, 0
  %249 = vmatprep.subr.bf16.mxu0 0
  %250 = vmatpush1.bf16.xpose.msra.mxu0 %v247
  %251 = vmatprep.subr.bf16.mxu0 0
  %252 = vmatpush1.bf16.xpose.msra.mxu0 %v244
  %253 = vmatprep.subr.bf16.mxu0 0
  %254 = vmatpush1.bf16.xpose.msra.mxu0 %v241
  %255 = vmatprep.subr.bf16.mxu0 0
  %256 = vmatpush1.bf16.xpose.msra.mxu0 %v238
  %257 = vmatprep.subr.bf16.mxu0 0
  %258 = vmatpush1.bf16.xpose.msra.mxu0 %v235
  %259 = vmatprep.subr.bf16.mxu0 0
  %260 = vmatpush1.bf16.xpose.msra.mxu0 %v232
  %261 = vmatprep.subr.bf16.mxu0 0
  %262 = vmatpush1.bf16.xpose.msra.mxu0 %v229
  %263 = vmatprep.subr.bf16.mxu0 0
  %264 = vmatpush1.bf16.xpose.msra.mxu0 %v226
  %265 = vmatprep.subr.bf16.mxu0 0
  %266 = vmatpush2.bf16.xpose.msra.mxu0 0
  %267 = vmatprep.subr.bf16.mxu0 0
  %268 = vmatpush2.bf16.xpose.msra.mxu0 0
  %269 = vmatprep.subr.bf16.mxu0 0
  %270 = vmatpush2.bf16.xpose.msra.mxu0 0
  %271 = vmatprep.subr.bf16.mxu0 0
  %272 = vmatpush2.bf16.xpose.msra.mxu0 0
  %273 = vmatprep.subr.bf16.mxu0 0
  %274 = vmatpush2.bf16.xpose.msra.mxu0 0
  %275 = vmatprep.subr.bf16.mxu0 0
  %276 = vmatpush2.bf16.xpose.msra.mxu0 0
  %277 = vmatprep.subr.bf16.mxu0 0
  %278 = vmatpush2.bf16.xpose.msra.mxu0 0
  %279 = vmatprep.subr.bf16.mxu0 0
  %280 = vmatpush2.bf16.xpose.msra.mxu0 0
  %281 = vmatprep.mubr.bf16.mxu0 0
  %282 = vmatmul.mubr.bf16.gmra.mxu0 %v223
  %v283 = vpop.f32.mrf.mxu0
  %v284 = vadd.f32 %v219, %v283
  %v285 = vpop.f32.mrf.mxu0
  %v286 = vpop.f32.mrf.mxu0
  %v287 = vpop.f32.mrf.mxu0
  %288 = vdwg.mxu0
  %289 = vst [vmem:[%s5] sm:$0xff] %v284
  // Predicated region
  $region22: #{simple_net_forward.1} parent=0 // pred_check
    _
  $region23: #{simple_net_forward.1} parent=0 // pred_check_branch
    %291 = sbr.rel (0) target = $region25
  $region24: #{simple_net_forward.1} parent=0 // pred_region
    _
  $region25: #{simple_net_forward.1} parent=0 // pred_fallthru
    _
  // Predicated region
  $region26: #{simple_net_forward.1} parent=0 // pred_check
    _
  $region27: #{simple_net_forward.1} parent=0 // pred_check_branch
    %293 = sbr.rel (0) target = $region29
  $region28: #{simple_net_forward.1} parent=0 // pred_region
    _
  $region29: #{simple_net_forward.1} parent=0 // pred_fallthru
    _

</llo_original>
